<compile_context>
chip_gen: v5e
topology: v5e:2x2
jax: 0.10.0
libtpu: 0.0.40
codegen_flags: <defaults>
</compile_context>

<pallas_src>
import functools

import jax
import jax.numpy as jnp
from jax.experimental import pallas as pl
from jax.experimental.pallas import tpu as pltpu


# ----------------------------- kernels ------------------------------------ #

def _assemble_kernel(prefix_ref, ctx_ref, suffix_ref, out_ref, *, n_ctx):
    # prefix_ref : (CB, 1, D)            -- <SOS> embeddings for this class block
    # ctx_ref    : (n_ctx, D)            -- shared learnable context (resident; constant index_map)
    # suffix_ref : (CB, S-1-n_ctx, D)    -- <CLS>...<EOS> + padding embeddings
    # out_ref    : (CB, S, D)            -- full prompt slab for this class block
    cb, _, d = out_ref.shape
    out_ref[:, 0:1, :] = prefix_ref[...]
    out_ref[:, 1:1 + n_ctx, :] = jnp.broadcast_to(ctx_ref[...][None, :, :], (cb, n_ctx, d))
    out_ref[:, 1 + n_ctx:, :] = suffix_ref[...]


def _head_kernel(prefix_ref, ctx_ref, base_ref, out_ref, *, n_ctx):
    # In-place variant: out_ref covers only the head rows [0, 1+n_ctx) of the
    # output, which is aliased to the pre-built base prompts buffer. The suffix
    # rows are never touched (no read, no write-back).
    # prefix_ref : (CB, 1, D)
    # ctx_ref    : (n_ctx, D)
    # base_ref   : HBM ref (aliased with the output); intentionally unused.
    # out_ref    : (CB, 1+n_ctx, D)
    del base_ref
    cb, _, d = out_ref.shape
    out_ref[:, 0:1, :] = prefix_ref[...]
    out_ref[:, 1:1 + n_ctx, :] = jnp.broadcast_to(ctx_ref[...][None, :, :], (cb, n_ctx, d))


# ----------------------------- wrappers ------------------------------------ #

_VMEM_LIMIT_BYTES = 32 * 1024 * 1024      # safe on v5e/v6e/v7x (<= physical on all)
_DEFAULT_VMEM_BUDGET = 24 * 1024 * 1024   # block-buffer budget, leaves headroom


def _pick_class_block(n_cls, per_class_bytes, vmem_budget_bytes):
    # 2x for double-buffering of every pipelined stream.
    cb = max(1, vmem_budget_bytes // (2 * per_class_bytes))
    return int(min(cb, n_cls))


def prompt_learner_forward(ctx, token_prefix, token_suffix, *, class_block=None,
                           vmem_budget_bytes=_DEFAULT_VMEM_BUDGET):
    """General path: prompts = cat([prefix, ctx(expanded), suffix], dim=1).

    ctx:          (n_ctx, D)            learnable context vectors (shared, non-CSC)
    token_prefix: (n_cls, 1, D)         frozen <SOS> embeddings
    token_suffix: (n_cls, S-1-n_ctx, D) frozen class-name/<EOS>/pad embeddings
    returns:      (n_cls, S, D)
    """
    n_ctx, d = ctx.shape
    n_cls, one, d2 = token_prefix.shape
    assert one == 1 and d2 == d
    assert n_ctx >= 1, "n_ctx must be >= 1"
    suf_len = token_suffix.shape[1]
    seq = 1 + n_ctx + suf_len
    dtype = token_prefix.dtype
    itemsize = jnp.dtype(dtype).itemsize

    ctx = ctx.astype(dtype)  # cast hoisted out of the kernel (done once)

    if class_block is None:
        per_class = (1 + suf_len + seq) * d * itemsize   # prefix + suffix in, full out
        class_block = _pick_class_block(n_cls, per_class, vmem_budget_bytes)
    class_block = int(min(class_block, n_cls))

    kernel = functools.partial(_assemble_kernel, n_ctx=n_ctx)
    grid = (pl.cdiv(n_cls, class_block),)

    grid_spec = pltpu.PrefetchScalarGridSpec(
        num_scalar_prefetch=0,
        grid=grid,
        in_specs=[
            pl.BlockSpec((class_block, 1, d), lambda i: (i, 0, 0)),        # prefix, per class-block
            pl.BlockSpec((n_ctx, d), lambda i: (0, 0)),                    # shared ctx (resident)
            pl.BlockSpec((class_block, suf_len, d), lambda i: (i, 0, 0)),  # suffix, per class-block
        ],
        out_specs=pl.BlockSpec((class_block, seq, d), lambda i: (i, 0, 0)),
    )

    return pl.pallas_call(
        kernel,
        out_shape=jax.ShapeDtypeStruct((n_cls, seq, d), dtype),
        grid_spec=grid_spec,
        compiler_params=pltpu.CompilerParams(
            dimension_semantics=("parallel",),
            vmem_limit_bytes=_VMEM_LIMIT_BYTES,
        ),
    )(token_prefix, ctx, token_suffix)


def build_base_prompts(token_prefix, token_suffix, n_ctx):
    """One-time (module-init) construction of the frozen part of the prompts
    buffer: prefix and suffix placed at their final positions, ctx rows zeroed."""
    n_cls, _, d = token_prefix.shape
    hole = jnp.zeros((n_cls, n_ctx, d), token_prefix.dtype)
    return jnp.concatenate([token_prefix, hole, token_suffix], axis=1)


def prompt_learner_forward_inplace(ctx, token_prefix, base_prompts, *, class_block=None,
                                   vmem_budget_bytes=_DEFAULT_VMEM_BUDGET):
    """Fast path: only the [SOS] + ctx head rows are written into the (aliased)
    pre-built base prompts buffer; the frozen suffix rows are never re-copied.

    Requires the head (1 + n_ctx) to be sublane-aligned (multiple of 8) or equal
    to the full sequence length, so the head block obeys the (8, 128) tiling rule.
    """
    n_ctx, d = ctx.shape
    n_cls, seq, d2 = base_prompts.shape
    assert d2 == d
    assert n_ctx >= 1, "n_ctx must be >= 1"
    head = 1 + n_ctx
    assert head % 8 == 0 or head == seq, (
        "in-place path needs a sublane-aligned head block; "
        "use prompt_learner_forward instead")
    dtype = base_prompts.dtype
    itemsize = jnp.dtype(dtype).itemsize

    ctx = ctx.astype(dtype)  # cast hoisted out of the kernel

    if class_block is None:
        per_class = (1 + head) * d * itemsize   # prefix in + head out
        class_block = _pick_class_block(n_cls, per_class, vmem_budget_bytes)
    class_block = int(min(class_block, n_cls))

    kernel = functools.partial(_head_kernel, n_ctx=n_ctx)
    grid = (pl.cdiv(n_cls, class_block),)

    grid_spec = pltpu.PrefetchScalarGridSpec(
        num_scalar_prefetch=0,
        grid=grid,
        in_specs=[
            pl.BlockSpec((class_block, 1, d), lambda i: (i, 0, 0)),   # prefix, per class-block
            pl.BlockSpec((n_ctx, d), lambda i: (0, 0)),               # shared ctx (resident)
            pl.BlockSpec(memory_space=pl.ANY),                        # aliased base, no DMA
        ],
        # Output block covers ONLY the head rows; suffix rows of the aliased
        # buffer are left untouched.
        out_specs=pl.BlockSpec((class_block, head, d), lambda i: (i, 0, 0)),
    )

    return pl.pallas_call(
        kernel,
        out_shape=jax.ShapeDtypeStruct((n_cls, seq, d), dtype),
        grid_spec=grid_spec,
        input_output_aliases={2: 0},   # base_prompts buffer <-> output buffer
        compiler_params=pltpu.CompilerParams(
            dimension_semantics=("parallel",),
            vmem_limit_bytes=_VMEM_LIMIT_BYTES,
        ),
    )(token_prefix, ctx, base_prompts)


# ------------------------------- demo -------------------------------------- #

if __name__ == "__main__":
    key = jax.random.PRNGKey(0)
    k1, k2, k3, k4 = jax.random.split(key, 4)

    # --- Config A: general full-assembly path, float32, ragged class grid ----
    n_cls, n_ctx, seq, d = 10, 4, 16, 128
    dtype = jnp.float32

    ctx = (0.02 * jax.random.normal(k1, (n_ctx, d))).astype(dtype)   # nn.init.normal_(std=0.02)
    embedding = jax.random.normal(k2, (n_cls, seq, d)).astype(dtype)  # stand-in token embeddings
    token_prefix = embedding[:, :1, :]
    token_suffix = embedding[:, 1 + n_ctx:, :]

    # class_block=4 -> 3 grid steps incl. a partial last block (exercises masking).
    prompts = prompt_learner_forward(ctx, token_prefix, token_suffix, class_block=4)
    prompts = jax.block_until_ready(prompts)

    ref = jnp.concatenate(
        [token_prefix, jnp.broadcast_to(ctx[None], (n_cls, n_ctx, d)), token_suffix], axis=1)
    assert prompts.shape == (n_cls, seq, d) and prompts.dtype == dtype
    assert jnp.array_equal(prompts, ref), "full path: mismatch vs reference"

    # --- Config B: in-place aliased path, bf16, head = 1 + n_ctx = 8 rows ----
    n_cls_b, n_ctx_b, seq_b, d_b = 12, 7, 24, 128
    dtype_b = jnp.bfloat16

    ctx_b = (0.02 * jax.random.normal(k3, (n_ctx_b, d_b))).astype(dtype_b)
    emb_b = jax.random.normal(k4, (n_cls_b, seq_b, d_b)).astype(dtype_b)
    prefix_b = emb_b[:, :1, :]
    suffix_b = emb_b[:, 1 + n_ctx_b:, :]

    base_b = build_base_prompts(prefix_b, suffix_b, n_ctx_b)   # one-time, at "init"
    prompts_b = prompt_learner_forward_inplace(ctx_b, prefix_b, base_b, class_block=8)
    prompts_b = jax.block_until_ready(prompts_b)

    ref_b = jnp.concatenate(
        [prefix_b, jnp.broadcast_to(ctx_b[None], (n_cls_b, n_ctx_b, d_b)), suffix_b], axis=1)
    assert prompts_b.shape == (n_cls_b, seq_b, d_b) and prompts_b.dtype == dtype_b
    assert jnp.array_equal(prompts_b, ref_b), "in-place path: mismatch vs reference"

    print("KERNEL_OK")
</pallas_src>

<mosaic_0001>
module attributes {stable_mosaic.version = 11 : i64} {
  func.func @_assemble_kernel(%arg0: i32, %arg1: memref<4x1x128xf32, #tpu.memory_space<vmem>>, %arg2: memref<4x128xf32, #tpu.memory_space<vmem>>, %arg3: memref<4x11x128xf32, #tpu.memory_space<vmem>>, %arg4: memref<4x16x128xf32, #tpu.memory_space<vmem>>) attributes {dimension_semantics = [#tpu.dimension_semantics<parallel>], iteration_bounds = array<i64: 3>, scalar_prefetch = 0 : i64, scratch_operands = 0 : i64, tpu.core_type = #tpu.core_type<tc>, window_params = [{transform_indices = @transform_0, window_bounds = array<i64: 4, 1, 128>}, {pipeline_mode = #tpu.pipeline_mode<synchronous>, transform_indices = @transform_1, window_bounds = array<i64: 4, 128>}, {transform_indices = @transform_2, window_bounds = array<i64: 4, 11, 128>}, {transform_indices = @transform_3, window_bounds = array<i64: 4, 16, 128>}]} {
    %c0 = arith.constant 0 : index
    %c0_0 = arith.constant 0 : index
    %c0_1 = arith.constant 0 : index
    %0 = vector.load %arg1[%c0, %c0_0, %c0_1] : memref<4x1x128xf32, #tpu.memory_space<vmem>>, vector<4x1x128xf32>
    %c0_2 = arith.constant 0 : index
    %c0_3 = arith.constant 0 : index
    %c0_4 = arith.constant 0 : index
    %1 = vector.load %arg4[%c0_2, %c0_3, %c0_4] : memref<4x16x128xf32, #tpu.memory_space<vmem>>, vector<4x1x128xf32>
    tpu.vector_store %arg4[%c0_2, %c0_3, %c0_4], %0 {strides = array<i32>} : memref<4x16x128xf32, #tpu.memory_space<vmem>>, vector<4x1x128xf32>,
    %c0_5 = arith.constant 0 : index
    %c0_6 = arith.constant 0 : index
    %2 = vector.load %arg2[%c0_5, %c0_6] : memref<4x128xf32, #tpu.memory_space<vmem>>, vector<4x128xf32>
    %3 = vector.shape_cast %2 : vector<4x128xf32> to vector<1x4x128xf32>
    %4 = vector.shape_cast %3 : vector<1x4x128xf32> to vector<1x4x128xf32>
    %5 = vector.broadcast %4 : vector<1x4x128xf32> to vector<4x4x128xf32>
    %c0_7 = arith.constant 0 : index
    %c1 = arith.constant 1 : index
    %c0_8 = arith.constant 0 : index
    %6 = vector.load %arg4[%c0_7, %c1, %c0_8] : memref<4x16x128xf32, #tpu.memory_space<vmem>>, vector<4x4x128xf32>
    tpu.vector_store %arg4[%c0_7, %c1, %c0_8], %5 {strides = array<i32>} : memref<4x16x128xf32, #tpu.memory_space<vmem>>, vector<4x4x128xf32>,
    %c0_9 = arith.constant 0 : index
    %c0_10 = arith.constant 0 : index
    %c0_11 = arith.constant 0 : index
    %7 = vector.load %arg3[%c0_9, %c0_10, %c0_11] : memref<4x11x128xf32, #tpu.memory_space<vmem>>, vector<4x11x128xf32>
    %c0_12 = arith.constant 0 : index
    %c5 = arith.constant 5 : index
    %c0_13 = arith.constant 0 : index
    %8 = vector.load %arg4[%c0_12, %c5, %c0_13] : memref<4x16x128xf32, #tpu.memory_space<vmem>>, vector<4x11x128xf32>
    tpu.vector_store %arg4[%c0_12, %c5, %c0_13], %7 {strides = array<i32>} : memref<4x16x128xf32, #tpu.memory_space<vmem>>, vector<4x11x128xf32>,
    return
  }
  func.func @transform_0(%arg0: i32) -> (i32, i32, i32) {
    %c0_i32 = arith.constant 0 : i32
    %c0_i32_0 = arith.constant 0 : i32
    %c0_i32_1 = arith.constant 0 : i32
    return %arg0, %c0_i32, %c0_i32_0 : i32, i32, i32
  }
  func.func @transform_1(%arg0: i32) -> (i32, i32) {
    %c0_i32 = arith.constant 0 : i32
    %c0_i32_0 = arith.constant 0 : i32
    %c0_i32_1 = arith.constant 0 : i32
    return %c0_i32, %c0_i32_0 : i32, i32
  }
  func.func @transform_2(%arg0: i32) -> (i32, i32, i32) {
    %c0_i32 = arith.constant 0 : i32
    %c0_i32_0 = arith.constant 0 : i32
    %c0_i32_1 = arith.constant 0 : i32
    return %arg0, %c0_i32, %c0_i32_0 : i32, i32, i32
  }
  func.func @transform_3(%arg0: i32) -> (i32, i32, i32) {
    %c0_i32 = arith.constant 0 : i32
    %c0_i32_0 = arith.constant 0 : i32
    %c0_i32_1 = arith.constant 0 : i32
    return %arg0, %c0_i32, %c0_i32_0 : i32, i32, i32
  }
}

</mosaic_0001>

<llo_original>
// kernel: tpu_custom_call.1
$region0: #{tpu_custom_call.1}
  #allocation0 [shape = 'u32[]', space=smem, size = 0x4, offset = 0x4, fixed_abs, tag = 'smem constant byte address 0x4 - core index']
  #allocation1 [shape = 'u32[72,128]{1,0:T(1,128)}', space=vmem, size = 0x9000, scoped, tag = 'internal scratch']
  %s0 = inlined_call_operand.hbm [shape: f32[10,1,128], index: 0, kind: input, shape index: {}]
  %s1 = inlined_call_operand.hbm [shape: f32[4,128], index: 1, kind: input, shape index: {}]
  %s2 = inlined_call_operand.hbm [shape: f32[10,11,128], index: 2, kind: input, shape index: {}]
  %s3 = inlined_call_operand.hbm [shape: f32[10,16,128], index: 3, kind: output, shape index: {}]
  %s4 = sld [smem:[#allocation0]]
  $region57: #{tpu_custom_call.1} parent=0
    _
  %s6 = ssub.s32 1, %s4
  %s7 = scalar_select 0, %s6, %s4
  $region1: #{tpu_custom_call.1} parent=0
    #allocation2 [shape = 'u8[4096]{0}', space=vmem, size = 0x1000, scoped, tag = 'input window, operand 0']
    #allocation3 [shape = 's32[2]{0}', space=sflag, size = 0x8, scoped, tag = 'scoped memory for tpu_custom_call.1']
    #allocation4 [shape = 's32[2]{0}', space=sflag, size = 0x8, scoped, tag = 'scoped memory for tpu_custom_call.1']
    #allocation5 [shape = 'u8[2048]{0}', space=vmem, size = 0x800, scoped, tag = 'input window, operand 1, single buffered']
    #allocation6 [shape = 's32[1]{0}', space=sflag, size = 0x4, scoped, tag = 'scoped memory for tpu_custom_call.1']
    #allocation7 [shape = 'u8[65536]{0}', space=vmem, size = 0x10000, scoped, tag = 'input window, operand 2']
    #allocation8 [shape = 'u8[65536]{0}', space=vmem, size = 0x10000, scoped, tag = 'output window, operand 0']
    %8 = vsyncpa [#allocation3], 0
    %s9 = scalar_lea.sflag [#allocation3], 1
    %10 = vsyncpa %s9, 0
    %11 = vsyncpa [#allocation6], 0
    %12 = vsyncpa [#allocation4], 0
    %s13 = scalar_lea.sflag [#allocation4], 1
    %14 = vsyncpa %s13, 0
    loop: start=0, step=1, limit=5
    $region2: #{tpu_custom_call.1} parent=1 // loop_pre_header
      _
    $region3: #{tpu_custom_call.1} parent=1 // loop_header
      %s16 = sphi 0, %s20
      %p17 = scmp.ge.s32.totalorder %s16, 5
      %s26 = sphi 0, %s28
      %s29 = sphi 0, %s26
      %s30 = sphi 0, %s29
      %s46 = sphi 0, %s30
      %s50 = sphi 0, %s50
      %s52 = sphi 0, %s50
      %s53 = sphi 0, %s52
      %s67 = sphi 0, %s53
      %s73 = sphi 0, %s75
      %s76 = sphi 0, %s73
      %s77 = sphi 0, %s76
      %s93 = sphi 0, %s77
      %s99 = sphi 0, %s101
      %s102 = sphi 0, %s99
      %s103 = sphi 0, %s102
      %s119 = sphi 0, %s103
    $region4: #{tpu_custom_call.1} parent=1 // loop_header_branch
      %19 = sbr.rel (%p17) target = $region8
    $region5: #{tpu_custom_call.1} parent=1 // loop_body
      %s21 = ssub.s32 %s16, 1
      %s22 = ssub.s32 %s16, 2
      %s23 = sadd.s32 %s16, 1
      %s24 = ssub.s32 %s16, %s23
      %p25 = scmp.eq.s32.totalorder %s24, 0
      %s27 = sadd.s32 %s26, 1
      %s28 = scalar_select %p25, %s26, %s27
      %p31 = pneg %p25
      %p32 = scmp.eq.s32.totalorder %s16, 2
      %p33 = por %p31, %p32
      %p34 = scmp.ne.s32.totalorder %s26, %s29
      %p35 = scmp.eq.s32.totalorder %s16, 0
      %p36 = por %p34, %p35
      %p37 = scmp.ne.s32.totalorder %s26, %s29
      %p38 = scmp.eq.s32.totalorder %s21, 2
      %p39 = por %p37, %p38
      %p40 = scmp.ne.s32.totalorder %s29, %s30
      %p41 = scmp.eq.s32.totalorder %s21, 0
      %p42 = por %p40, %p41
      %p43 = scmp.ne.s32.totalorder %s29, %s30
      %p44 = scmp.eq.s32.totalorder %s22, 2
      %p45 = por %p43, %p44
      %p47 = scmp.ne.s32.totalorder %s30, %s46
      %p48 = scmp.eq.s32.totalorder %s22, 0
      %p49 = por %p47, %p48
      %s51 = sadd.s32 %s50, 1
      %p54 = scmp.eq.s32.totalorder %s16, 2
      %p55 = scmp.ne.s32.totalorder %s50, %s52
      %p56 = scmp.eq.s32.totalorder %s16, 0
      %p57 = por %p55, %p56
      %p58 = scmp.ne.s32.totalorder %s50, %s52
      %p59 = scmp.eq.s32.totalorder %s21, 2
      %p60 = por %p58, %p59
      %p61 = scmp.ne.s32.totalorder %s52, %s53
      %p62 = scmp.eq.s32.totalorder %s21, 0
      %p63 = por %p61, %p62
      %p64 = scmp.ne.s32.totalorder %s52, %s53
      %p65 = scmp.eq.s32.totalorder %s22, 2
      %p66 = por %p64, %p65
      %p68 = scmp.ne.s32.totalorder %s53, %s67
      %p69 = scmp.eq.s32.totalorder %s22, 0
      %p70 = por %p68, %p69
      %s71 = ssub.s32 %s16, %s23
      %p72 = scmp.eq.s32.totalorder %s71, 0
      %s74 = sadd.s32 %s73, 1
      %s75 = scalar_select %p72, %s73, %s74
      %p78 = pneg %p72
      %p79 = scmp.eq.s32.totalorder %s16, 2
      %p80 = por %p78, %p79
      %p81 = scmp.ne.s32.totalorder %s73, %s76
      %p82 = scmp.eq.s32.totalorder %s16, 0
      %p83 = por %p81, %p82
      %p84 = scmp.ne.s32.totalorder %s73, %s76
      %p85 = scmp.eq.s32.totalorder %s21, 2
      %p86 = por %p84, %p85
      %p87 = scmp.ne.s32.totalorder %s76, %s77
      %p88 = scmp.eq.s32.totalorder %s21, 0
      %p89 = por %p87, %p88
      %p90 = scmp.ne.s32.totalorder %s76, %s77
      %p91 = scmp.eq.s32.totalorder %s22, 2
      %p92 = por %p90, %p91
      %p94 = scmp.ne.s32.totalorder %s77, %s93
      %p95 = scmp.eq.s32.totalorder %s22, 0
      %p96 = por %p94, %p95
      %s97 = ssub.s32 %s16, %s23
      %p98 = scmp.eq.s32.totalorder %s97, 0
      %s100 = sadd.s32 %s99, 1
      %s101 = scalar_select %p98, %s99, %s100
      %p104 = pneg %p98
      %p105 = scmp.eq.s32.totalorder %s16, 2
      %p106 = por %p104, %p105
      %p107 = scmp.ne.s32.totalorder %s99, %s102
      %p108 = scmp.eq.s32.totalorder %s16, 0
      %p109 = por %p107, %p108
      %p110 = scmp.ne.s32.totalorder %s99, %s102
      %p111 = scmp.eq.s32.totalorder %s21, 2
      %p112 = por %p110, %p111
      %p113 = scmp.ne.s32.totalorder %s102, %s103
      %p114 = scmp.eq.s32.totalorder %s21, 0
      %p115 = por %p113, %p114
      %p116 = scmp.ne.s32.totalorder %s102, %s103
      %p117 = scmp.eq.s32.totalorder %s22, 2
      %p118 = por %p116, %p117
      %p120 = scmp.ne.s32.totalorder %s103, %s119
      %p121 = scmp.eq.s32.totalorder %s22, 0
      %p122 = por %p120, %p121
      %p123 = scmp.le.s32.totalorder 1, %s16
      %p124 = scmp.lt.s32.totalorder %s16, 4
      %p125 = pnand %p123, %p124
      %p126 = pneg %p125
      // Predicated region
      $region9: #{tpu_custom_call.1} parent=5 // pred_check
        _
      $region10: #{tpu_custom_call.1} parent=5 // pred_check_branch
        %128 = sbr.rel (%p125) target = $region12
      $region11: #{tpu_custom_call.1} parent=5 // pred_region
        %s129 = ssub.s32 %s16, 1
        // Predicated region
        $region13: #{tpu_custom_call.1} parent=11 // pred_check
          %p130 = pneg %p63
        $region14: #{tpu_custom_call.1} parent=11 // pred_check_branch
          %132 = sbr.rel (%p130) target = $region16
        $region15: #{tpu_custom_call.1} parent=11 // pred_region
          %134 = vsyncadd [#allocation6], 0
          %s136 = sshll.u32 %s1, 4
          %s137 = int_to_ptr.hbm [resolvable:$true] %s136
          %s138 = sshll.u32 [#allocation5], 4
          %s139 = int_to_ptr.vmem [resolvable:$true] %s138
          %141 = dma.hbm_to_vmem [thread:$0]  %s137, 64, %s139, [#allocation6]
        $region16: #{tpu_custom_call.1} parent=11 // pred_fallthru
          _
      $region12: #{tpu_custom_call.1} parent=5 // pred_fallthru
        _
      %p142 = scmp.lt.s32.totalorder %s16, 3
      // Predicated region
      $region17: #{tpu_custom_call.1} parent=5 // pred_check
        %p143 = pneg %p142
      $region18: #{tpu_custom_call.1} parent=5 // pred_check_branch
        %145 = sbr.rel (%p143) target = $region20
      $region19: #{tpu_custom_call.1} parent=5 // pred_region
        // Predicated region
        $region21: #{tpu_custom_call.1} parent=19 // pred_check
          %p146 = pneg %p36
        $region22: #{tpu_custom_call.1} parent=19 // pred_check_branch
          %148 = sbr.rel (%p146) target = $region24
        $region23: #{tpu_custom_call.1} parent=19 // pred_region
          %s149 = sand.u32 %s16, 1
          %s150 = scalar_lea.sflag [#allocation3], %s149
          %s151 = sand.u32 %s26, 1
          %s152 = smul.addr %s151, 4
          %s153 = scalar_lea.vmem [#allocation2], %s152
          %s154 = smul.u32 4, %s16
          %s155 = ssub.s32 10, %s154
          %p156 = scmp.lt.s32.totalorder %s155, 4
          %s157 = scalar_select %p156, %s155, 4
          %s158 = ssub.s32 4, %s157
          %s159 = sshll.u32 %s158, 4
          %160 = vsyncadd %s150, %s159
          %p161 = scmp.ne.s32.totalorder 0, %s157
          %s162 = scalar_lea.hbm %s0, %s154
          %s163 = sshll.u32 %s162, 4
          %s164 = int_to_ptr.hbm [resolvable:$true] %s163
          %s165 = sshll.u32 %s153, 4
          %s166 = int_to_ptr.vmem [resolvable:$true] %s165
          %s167 = sshll.u32 %s157, 4
          %171 = dma.hbm_to_vmem [thread:$0]  (%p161), %s164, %s167, %s166, %s150, 16, 16, 1
        $region24: #{tpu_custom_call.1} parent=19 // pred_fallthru
          _
        // Predicated region
        $region25: #{tpu_custom_call.1} parent=19 // pred_check
          %p172 = pneg %p83
        $region26: #{tpu_custom_call.1} parent=19 // pred_check_branch
          %174 = sbr.rel (%p172) target = $region28
        $region27: #{tpu_custom_call.1} parent=19 // pred_region
          %s175 = sand.u32 %s16, 1
          %s176 = scalar_lea.sflag [#allocation3], %s175
          %s177 = sand.u32 %s73, 1
          %s178 = smul.addr %s177, 64
          %s179 = scalar_lea.vmem [#allocation7], %s178
          %s180 = smul.u32 4, %s16
          %s181 = ssub.s32 10, %s180
          %p182 = scmp.lt.s32.totalorder %s181, 4
          %s183 = scalar_select %p182, %s181, 4
          %s184 = smul.u32 8, %s183
          %s185 = smul.u32 %s184, 2
          %s186 = ssub.s32 64, %s185
          %s187 = sshll.u32 %s186, 4
          %188 = vsyncadd %s176, %s187
          %p189 = scmp.ne.s32.totalorder 0, %s185
          %s190 = smul.addr %s180, 2
          %s191 = smul.addr %s190, 8
          %s192 = scalar_lea.hbm %s2, %s191
          %s193 = smul.u32 %s183, 2
          %s194 = smul.u32 8, %s193
          %s195 = sshll.u32 %s192, 4
          %s196 = int_to_ptr.hbm [resolvable:$true] %s195
          %s197 = sshll.u32 %s179, 4
          %s198 = int_to_ptr.vmem [resolvable:$true] %s197
          %s199 = sshll.u32 %s194, 4
          %203 = dma.hbm_to_vmem [thread:$0]  (%p189), %s196, %s199, %s198, %s176, 128, 128, 8
        $region28: #{tpu_custom_call.1} parent=19 // pred_fallthru
          _
      $region20: #{tpu_custom_call.1} parent=5 // pred_fallthru
        _
      %p204 = scmp.le.s32.totalorder 1, %s16
      %p205 = scmp.lt.s32.totalorder %s16, 4
      %p206 = pnand %p204, %p205
      %p207 = pneg %p206
      // Predicated region
      $region29: #{tpu_custom_call.1} parent=5 // pred_check
        _
      $region30: #{tpu_custom_call.1} parent=5 // pred_check_branch
        %209 = sbr.rel (%p206) target = $region32
      $region31: #{tpu_custom_call.1} parent=5 // pred_region
        %s210 = ssub.s32 %s16, 1
        %s211 = sand.u32 %s21, 1
        %s212 = scalar_lea.sflag [#allocation3], %s211
        %s213 = sand.u32 %s29, 1
        %s214 = smul.addr %s213, 4
        %s215 = scalar_lea.vmem [#allocation2], %s214
        // Predicated region
        $region33: #{tpu_custom_call.1} parent=31 // pred_check
          %p216 = pneg %p42
        $region34: #{tpu_custom_call.1} parent=31 // pred_check_branch
          %218 = sbr.rel (%p216) target = $region36
        $region35: #{tpu_custom_call.1} parent=31 // pred_region
          %220 = dma.done %s212, 64
        $region36: #{tpu_custom_call.1} parent=31 // pred_fallthru
          _
        // Predicated region
        $region37: #{tpu_custom_call.1} parent=31 // pred_check
          %p221 = pneg %p63
        $region38: #{tpu_custom_call.1} parent=31 // pred_check_branch
          %223 = sbr.rel (%p221) target = $region40
        $region39: #{tpu_custom_call.1} parent=31 // pred_region
          %225 = dma.done [#allocation6], 64
        $region40: #{tpu_custom_call.1} parent=31 // pred_fallthru
          _
        %s226 = sand.u32 %s21, 1
        %s227 = scalar_lea.sflag [#allocation3], %s226
        %s228 = sand.u32 %s76, 1
        %s229 = smul.addr %s228, 64
        %s230 = scalar_lea.vmem [#allocation7], %s229
        // Predicated region
        $region41: #{tpu_custom_call.1} parent=31 // pred_check
          %p231 = pneg %p89
        $region42: #{tpu_custom_call.1} parent=31 // pred_check_branch
          %233 = sbr.rel (%p231) target = $region44
        $region43: #{tpu_custom_call.1} parent=31 // pred_region
          %235 = dma.done %s227, 1024
        $region44: #{tpu_custom_call.1} parent=31 // pred_fallthru
          _
        %s236 = sand.u32 %s21, 1
        %s237 = scalar_lea.sflag [#allocation3], %s236
        %s238 = sand.u32 %s29, 1
        %s239 = smul.addr %s238, 4
        %s240 = scalar_lea.vmem [#allocation2], %s239
        %p241 = pneg %p42
        %p242 = pneg %p39
        %p243 = pneg %p63
        %p244 = pneg %p60
        %s245 = sand.u32 %s21, 1
        %s246 = scalar_lea.sflag [#allocation3], %s245
        %s247 = sand.u32 %s76, 1
        %s248 = smul.addr %s247, 64
        %s249 = scalar_lea.vmem [#allocation7], %s248
        %p250 = pneg %p89
        %p251 = pneg %p86
        %p252 = pneg %p115
        %p253 = pneg %p112
        %s254 = sand.u32 %s102, 1
        %s255 = scalar_lea.sflag [#allocation4], %s254
        %s256 = sand.u32 %s102, 1
        %s257 = smul.addr %s256, 64
        %s258 = scalar_lea.vmem [#allocation8], %s257
        %s259 = smul.u32 4, %s21
        %s260 = ssub.s32 10, %s259
        %p261 = scmp.lt.s32.totalorder %s260, 4
        %s262 = scalar_select %p261, %s260, 4
        %s263 = smul.u32 4, %s21
        %s264 = ssub.s32 10, %s263
        %p265 = scmp.lt.s32.totalorder %s264, 4
        %s266 = scalar_select %p265, %s264, 4
        %s267 = smul.u32 8, %s266
        %s268 = smul.u32 %s267, 2
        %s269 = smul.u32 4, %s21
        %s270 = ssub.s32 10, %s269
        %p271 = scmp.lt.s32.totalorder %s270, 4
        %s272 = scalar_select %p271, %s270, 4
        %s273 = smul.u32 8, %s272
        %s274 = smul.u32 %s273, 2
        %v275 = vld [vmem:[%s215] sm:$0x1]
        %v276 = vld [vmem:[%s215 + $0x1] sm:$0x1]
        %v277 = vld [vmem:[%s215 + $0x2] sm:$0x1]
        %v278 = vld [vmem:[%s215 + $0x3] sm:$0x1]
        %279 = vst [vmem:[%s258] sm:$0x1] %v275
        %280 = vst [vmem:[%s258 + $0x10] sm:$0x1] %v276
        %281 = vst [vmem:[%s258 + $0x20] sm:$0x1] %v277
        %282 = vst [vmem:[%s258 + $0x30] sm:$0x1] %v278
        %v283 = vld [vmem:[#allocation5] sm:$0xf]
        %284 = vst [vmem:[%s258 + $0x1] sm:$0xf] %v283
        %285 = vst [vmem:[%s258 + $0x11] sm:$0xf] %v283
        %286 = vst [vmem:[%s258 + $0x21] sm:$0xf] %v283
        %287 = vst [vmem:[%s258 + $0x31] sm:$0xf] %v283
        %v288 = vld [vmem:[%s230] sm:$0xff]
        %v289 = vld [vmem:[%s230 + $0x8] sm:$0x7]
        %v290 = vld [vmem:[%s230 + $0x10] sm:$0xff]
        %v291 = vld [vmem:[%s230 + $0x18] sm:$0x7]
        %v292 = vld [vmem:[%s230 + $0x20] sm:$0xff]
        %v293 = vld [vmem:[%s230 + $0x28] sm:$0x7]
        %v294 = vld [vmem:[%s230 + $0x30] sm:$0xff]
        %v295 = vld [vmem:[%s230 + $0x38] sm:$0x7]
        %296 = vst [vmem:[%s258 + $0x5] sm:$0xff] %v288
        %297 = vst [vmem:[%s258 + $0xd] sm:$0x7] %v289
        %298 = vst [vmem:[%s258 + $0x15] sm:$0xff] %v290
        %299 = vst [vmem:[%s258 + $0x1d] sm:$0x7] %v291
        %300 = vst [vmem:[%s258 + $0x25] sm:$0xff] %v292
        %301 = vst [vmem:[%s258 + $0x2d] sm:$0x7] %v293
        %302 = vst [vmem:[%s258 + $0x35] sm:$0xff] %v294
        %303 = vst [vmem:[%s258 + $0x3d] sm:$0x7] %v295
        %s304 = sand.u32 %s102, 1
        %s305 = scalar_lea.sflag [#allocation4], %s304
        %s306 = sand.u32 %s102, 1
        %s307 = smul.addr %s306, 64
        %s308 = scalar_lea.vmem [#allocation8], %s307
        // Predicated region
        $region45: #{tpu_custom_call.1} parent=31 // pred_check
          %p309 = pneg %p112
        $region46: #{tpu_custom_call.1} parent=31 // pred_check_branch
          %311 = sbr.rel (%p309) target = $region48
        $region47: #{tpu_custom_call.1} parent=31 // pred_region
          %s312 = smul.u32 4, %s21
          %s313 = ssub.s32 10, %s312
          %p314 = scmp.lt.s32.totalorder %s313, 4
          %s315 = scalar_select %p314, %s313, 4
          %s316 = smul.u32 8, %s315
          %s317 = smul.u32 %s316, 2
          %s318 = ssub.s32 64, %s317
          %s319 = sshll.u32 %s318, 4
          %320 = vsyncadd %s305, %s319
          %p321 = scmp.ne.s32.totalorder 0, %s317
          %s322 = smul.addr %s312, 2
          %s323 = smul.addr %s322, 8
          %s324 = scalar_lea.hbm %s3, %s323
          %s325 = smul.u32 %s315, 2
          %s326 = smul.u32 8, %s325
          %s327 = sshll.u32 %s308, 4
          %s328 = int_to_ptr.vmem [resolvable:$true] %s327
          %s329 = sshll.u32 %s324, 4
          %s330 = int_to_ptr.hbm [resolvable:$true] %s329
          %s331 = sshll.u32 %s326, 4
          %335 = dma.vmem_to_hbm [thread:$0]  (%p321), %s328, %s331, %s330, %s305, 128, 128, 8
        $region48: #{tpu_custom_call.1} parent=31 // pred_fallthru
          _
      $region32: #{tpu_custom_call.1} parent=5 // pred_fallthru
        _
      %p336 = scmp.le.s32.totalorder 2, %s16
      // Predicated region
      $region49: #{tpu_custom_call.1} parent=5 // pred_check
        %p337 = pneg %p336
      $region50: #{tpu_custom_call.1} parent=5 // pred_check_branch
        %339 = sbr.rel (%p337) target = $region52
      $region51: #{tpu_custom_call.1} parent=5 // pred_region
        %s340 = ssub.s32 %s16, 2
        // Predicated region
        $region53: #{tpu_custom_call.1} parent=51 // pred_check
          %p341 = pneg %p118
        $region54: #{tpu_custom_call.1} parent=51 // pred_check_branch
          %343 = sbr.rel (%p341) target = $region56
        $region55: #{tpu_custom_call.1} parent=51 // pred_region
          %s344 = sand.u32 %s103, 1
          %s345 = scalar_lea.sflag [#allocation4], %s344
          %s346 = sand.u32 %s103, 1
          %s347 = smul.addr %s346, 64
          %s348 = scalar_lea.vmem [#allocation8], %s347
          %350 = dma.done %s345, 1024
        $region56: #{tpu_custom_call.1} parent=51 // pred_fallthru
          _
      $region52: #{tpu_custom_call.1} parent=5 // pred_fallthru
        _
    $region6: #{tpu_custom_call.1} parent=1 // loop_footer
      %s20 = sadd.s32 1, %s16
    $region7: #{tpu_custom_call.1} parent=1 // loop_footer_branch
      %15 = sbr.rel target = $region3
    $region8: #{tpu_custom_call.1} parent=1 // loop_exit
      _
    %351 = vsyncpa [#allocation3], 1
    %s352 = scalar_lea.sflag [#allocation3], 1
    %353 = vsyncpa %s352, 1
    %354 = vsyncpa [#allocation6], 1
    %355 = vsyncpa [#allocation4], 1
    %s356 = scalar_lea.sflag [#allocation4], 1
    %357 = vsyncpa %s356, 1

</llo_original>
